<compile_context>
chip_gen: v5e
topology: v5e:2x2
jax: 0.10.0
libtpu: 0.0.40
codegen_flags: <defaults>
</compile_context>

<pallas_src>
import math

import jax
import jax.numpy as jnp
from jax.experimental import pallas as pl
from jax.experimental.pallas import tpu as pltpu


# ----------------------------- Pallas kernel --------------------------------
def _sparse_linear_kernel(kval_ref, x_ref, w_ref, s_ref, o_ref, acc_ref):
    """grid = (N_tiles, K_tiles)  (reduction axis K last)

       kval_ref: (1,)     f32 SMEM   -- percentile threshold
       x_ref:    (Bp, TK)  VMEM      -- activations tile
       w_ref:    (TK, TN)  VMEM      -- weight.T tile (weight_before_pruned)
       s_ref:    (TK, TN)  VMEM      -- score.T tile
       o_ref:    (Bp, TN)  VMEM      -- output tile (resident across K)
       acc_ref:  (Bp, TN)  f32 VMEM scratch accumulator
    """
    k = pl.program_id(1)

    @pl.when(k == 0)
    def _():
        acc_ref[...] = jnp.zeros_like(acc_ref)

    kval = kval_ref[0]
    w = w_ref[...]
    # GetBinaryMask.forward fused with the multiply:
    #   where(score < kval, 0, 1) * w  ==  where(score < kval, 0, w)
    pruned_w = jnp.where(s_ref[...] < kval, jnp.zeros_like(w), w)
    acc_ref[...] += jnp.dot(x_ref[...], pruned_w,
                            preferred_element_type=jnp.float32)

    @pl.when(k == pl.num_programs(1) - 1)
    def _():
        o_ref[...] = acc_ref[...].astype(o_ref.dtype)


# ------------------------------ host wrapper ---------------------------------
def _round_up(v, m):
    return (v + m - 1) // m * m


def _kth_smallest(score_flat, k):
    """torch.kthvalue(k) (1-based, k-th smallest) via top_k on the cheaper side."""
    n = score_flat.shape[0]
    m = n - k + 1                       # k-th smallest == m-th largest
    if k <= m:
        vals, _ = jax.lax.top_k(-score_flat, k)
        return -vals[k - 1]
    vals, _ = jax.lax.top_k(score_flat, m)
    return vals[m - 1]


def sparse_linear_forward(x, weight, score, pruning_rate,
                          *, tn=512, tk=512, compute_dtype=None):
    """Forward of SparseModule(nn.Linear(IN, OUT, bias=False), pruning_rate).

    x:      (B, IN)      weight, score: (OUT, IN)      returns (B, OUT) f32.
    compute_dtype=jnp.bfloat16 optionally halves HBM traffic / doubles MXU
    rate (accumulation stays f32).
    """
    out_f, in_f = weight.shape
    b = x.shape[0]

    # ---- kthvalue threshold (scalar glue, top_k instead of a full sort) ----
    numel = out_f * in_f
    q = pruning_rate * 100.0
    k = 1 + round(0.01 * float(q) * (numel - 1))      # torch kthvalue index
    kval = _kth_smallest(score.reshape(-1), k).reshape((1,)).astype(jnp.float32)

    # ---- present operands as (K, N): one-time transpose, lane-dense output --
    w_t = weight.T                                     # (IN, OUT)
    s_t = score.T                                      # (IN, OUT)
    if compute_dtype is not None:
        x = x.astype(compute_dtype)
        w_t = w_t.astype(compute_dtype)

    # ---- pad to TPU-friendly tiles (zeros are harmless: padded weight = 0) --
    bp = _round_up(b, 8)
    tn = min(tn, _round_up(out_f, 128))
    tk = min(tk, _round_up(in_f, 128))
    n_pad = _round_up(out_f, tn)
    k_pad = _round_up(in_f, tk)

    x_p = jnp.pad(x,   ((0, bp - b),       (0, k_pad - in_f)))
    w_p = jnp.pad(w_t, ((0, k_pad - in_f), (0, n_pad - out_f)))
    s_p = jnp.pad(s_t, ((0, k_pad - in_f), (0, n_pad - out_f)))

    grid = (n_pad // tn, k_pad // tk)

    out = pl.pallas_call(
        _sparse_linear_kernel,
        out_shape=jax.ShapeDtypeStruct((bp, n_pad), jnp.float32),
        grid_spec=pltpu.PrefetchScalarGridSpec(
            num_scalar_prefetch=0,
            grid=grid,
            in_specs=[
                pl.BlockSpec(memory_space=pltpu.MemorySpace.SMEM),   # kval
                pl.BlockSpec((bp, tk), lambda n, kk: (0, kk)),       # x
                pl.BlockSpec((tk, tn), lambda n, kk: (kk, n)),       # weight.T
                pl.BlockSpec((tk, tn), lambda n, kk: (kk, n)),       # score.T
            ],
            out_specs=pl.BlockSpec((bp, tn), lambda n, kk: (0, n)),
            scratch_shapes=[pltpu.VMEM((bp, tn), jnp.float32)],
        ),
        compiler_params=pltpu.CompilerParams(
            dimension_semantics=("parallel", "arbitrary")),
        cost_estimate=pl.CostEstimate(
            flops=2 * bp * n_pad * k_pad,
            transcendentals=0,
            bytes_accessed=(w_p.size * w_p.dtype.itemsize
                            + s_p.size * s_p.dtype.itemsize
                            + x_p.size * x_p.dtype.itemsize
                            + bp * n_pad * 4),
        ),
    )(kval, x_p, w_p, s_p)

    return out[:b, :out_f]
    # TODO(synk): backward (straight-through estimator on scores) is not
    # implemented — this kernel covers the module's forward pass only.


# ---------------------- deterministic param init ----------------------------
def kaiming_uniform(key, shape, fan_in):
    # nn.init.kaiming_uniform_(mode='fan_in', nonlinearity='relu'):
    # gain = sqrt(2), bound = gain * sqrt(3 / fan_in)
    bound = math.sqrt(2.0) * math.sqrt(3.0 / fan_in)
    return jax.random.uniform(key, shape, jnp.float32, minval=-bound, maxval=bound)


if __name__ == "__main__":
    B, IN_F, OUT_F = 8, 32, 16
    PRUNING_RATE = 0.5

    root = jax.random.PRNGKey(0)
    k_x, k_w, k_s = jax.random.split(root, 3)

    x = jax.random.normal(k_x, (B, IN_F), jnp.float32)
    # weight: init_mode='kaiming_uniform' (default); score: always kaiming_uniform
    weight = kaiming_uniform(k_w, (OUT_F, IN_F), fan_in=IN_F)
    score = kaiming_uniform(k_s, (OUT_F, IN_F), fan_in=IN_F)

    y = sparse_linear_forward(x, weight, score, PRUNING_RATE)
    y = jax.block_until_ready(y)

    # reference check in plain JAX (exact module semantics, f32)
    numel = OUT_F * IN_F
    k = 1 + round(0.01 * (PRUNING_RATE * 100.0) * (numel - 1))
    kval = jnp.sort(score.reshape(-1))[k - 1]
    mask = jnp.where(score < kval, 0.0, 1.0)
    y_ref = x @ (mask * weight).T
    assert y.shape == y_ref.shape
    assert jnp.allclose(y, y_ref, atol=1e-5, rtol=1e-5), "mismatch vs reference"

    print("KERNEL_OK")
</pallas_src>

<mosaic_0001>
module attributes {stable_mosaic.version = 11 : i64} {
  func.func @_sparse_linear_kernel(%arg0: i32, %arg1: i32, %arg2: memref<1xf32, #tpu.memory_space<smem>>, %arg3: memref<8x128xf32, #tpu.memory_space<vmem>>, %arg4: memref<128x128xf32, #tpu.memory_space<vmem>>, %arg5: memref<128x128xf32, #tpu.memory_space<vmem>>, %arg6: memref<8x128xf32, #tpu.memory_space<vmem>>, %arg7: memref<8x128xf32, #tpu.memory_space<vmem>>) attributes {dimension_semantics = [#tpu.dimension_semantics<parallel>, #tpu.dimension_semantics<arbitrary>], iteration_bounds = array<i64: 1, 1>, scalar_prefetch = 0 : i64, scratch_operands = 1 : i64, tpu.core_type = #tpu.core_type<tc>, window_params = [{transform_indices = @transform_0, window_bounds = array<i64: 1>}, {transform_indices = @transform_1, window_bounds = array<i64: 8, 128>}, {transform_indices = @transform_2, window_bounds = array<i64: 128, 128>}, {transform_indices = @transform_3, window_bounds = array<i64: 128, 128>}, {transform_indices = @transform_4, window_bounds = array<i64: 8, 128>}]} {
    %c0_i32 = arith.constant 0 : i32
    %0 = arith.cmpi eq, %arg1, %c0_i32 : i32
    %1 = arith.extui %0 : i1 to i32
    %c0_i32_0 = arith.constant 0 : i32
    %2 = arith.cmpi ne, %1, %c0_i32_0 : i32
    scf.if %2 {
      %cst_14 = arith.constant 0.000000e+00 : f32
      %18 = vector.broadcast %cst_14 : f32 to vector<8x128xf32>
      %c0_15 = arith.constant 0 : index
      %c0_16 = arith.constant 0 : index
      %19 = vector.load %arg7[%c0_15, %c0_16] : memref<8x128xf32, #tpu.memory_space<vmem>>, vector<8x128xf32>
      tpu.vector_store %arg7[%c0_15, %c0_16], %18 {strides = array<i32>} : memref<8x128xf32, #tpu.memory_space<vmem>>, vector<8x128xf32>,
    } else {
    }
    %c0 = arith.constant 0 : index
    %3 = memref.load %arg2[%c0] : memref<1xf32, #tpu.memory_space<smem>>
    %c0_1 = arith.constant 0 : index
    %c0_2 = arith.constant 0 : index
    %4 = vector.load %arg4[%c0_1, %c0_2] : memref<128x128xf32, #tpu.memory_space<vmem>>, vector<128x128xf32>
    %c0_3 = arith.constant 0 : index
    %c0_4 = arith.constant 0 : index
    %5 = vector.load %arg5[%c0_3, %c0_4] : memref<128x128xf32, #tpu.memory_space<vmem>>, vector<128x128xf32>
    %6 = vector.broadcast %3 : f32 to vector<128x128xf32>
    %7 = arith.cmpf olt, %5, %6 : vector<128x128xf32>
    %cst = arith.constant 0.000000e+00 : f32
    %8 = vector.broadcast %cst : f32 to vector<128x128xf32>
    %9 = arith.select %7, %8, %4 : vector<128x128xi1>, vector<128x128xf32>
    %c0_5 = arith.constant 0 : index
    %c0_6 = arith.constant 0 : index
    %10 = vector.load %arg7[%c0_5, %c0_6] : memref<8x128xf32, #tpu.memory_space<vmem>>, vector<8x128xf32>
    %c0_7 = arith.constant 0 : index
    %c0_8 = arith.constant 0 : index
    %11 = vector.load %arg3[%c0_7, %c0_8] : memref<8x128xf32, #tpu.memory_space<vmem>>, vector<8x128xf32>
    %cst_9 = arith.constant dense<0.000000e+00> : vector<8x128xf32>
    %12 = tpu.matmul %11, %9, %cst_9 {dimension_numbers = #tpu.dot_dimension_numbers<[1], [0], [0], [1], [0, 0, 1, 1], [], []>} : vector<8x128xf32>, vector<128x128xf32>, vector<8x128xf32> -> vector<8x128xf32>
    %13 = arith.addf %10, %12 : vector<8x128xf32>
    %c0_10 = arith.constant 0 : index
    %c0_11 = arith.constant 0 : index
    %14 = vector.load %arg7[%c0_10, %c0_11] : memref<8x128xf32, #tpu.memory_space<vmem>>, vector<8x128xf32>
    tpu.vector_store %arg7[%c0_10, %c0_11], %13 {strides = array<i32>} : memref<8x128xf32, #tpu.memory_space<vmem>>, vector<8x128xf32>,
    %c0_i32_12 = arith.constant 0 : i32
    %15 = arith.cmpi eq, %arg1, %c0_i32_12 : i32
    %16 = arith.extui %15 : i1 to i32
    %c0_i32_13 = arith.constant 0 : i32
    %17 = arith.cmpi ne, %16, %c0_i32_13 : i32
    scf.if %17 {
      %c0_14 = arith.constant 0 : index
      %c0_15 = arith.constant 0 : index
      %18 = vector.load %arg7[%c0_14, %c0_15] : memref<8x128xf32, #tpu.memory_space<vmem>>, vector<8x128xf32>
      %c0_16 = arith.constant 0 : index
      %c0_17 = arith.constant 0 : index
      %19 = vector.load %arg6[%c0_16, %c0_17] : memref<8x128xf32, #tpu.memory_space<vmem>>, vector<8x128xf32>
      tpu.vector_store %arg6[%c0_16, %c0_17], %18 {strides = array<i32>} : memref<8x128xf32, #tpu.memory_space<vmem>>, vector<8x128xf32>,
    } else {
    }
    return
  }
  func.func @transform_0(%arg0: i32, %arg1: i32) -> i32 {
    %c0_i32 = arith.constant 0 : i32
    %c0_i32_0 = arith.constant 0 : i32
    return %c0_i32 : i32
  }
  func.func @transform_1(%arg0: i32, %arg1: i32) -> (i32, i32) {
    %c0_i32 = arith.constant 0 : i32
    %c0_i32_0 = arith.constant 0 : i32
    return %c0_i32, %arg1 : i32, i32
  }
  func.func @transform_2(%arg0: i32, %arg1: i32) -> (i32, i32) {
    %c0_i32 = arith.constant 0 : i32
    return %arg1, %arg0 : i32, i32
  }
  func.func @transform_3(%arg0: i32, %arg1: i32) -> (i32, i32) {
    %c0_i32 = arith.constant 0 : i32
    return %arg1, %arg0 : i32, i32
  }
  func.func @transform_4(%arg0: i32, %arg1: i32) -> (i32, i32) {
    %c0_i32 = arith.constant 0 : i32
    %c0_i32_0 = arith.constant 0 : i32
    return %c0_i32, %arg0 : i32, i32
  }
}

</mosaic_0001>

<llo_original>
// kernel: tpu_custom_call.1
$region0: #{tpu_custom_call.1}
  #allocation0 [shape = 'u32[]', space=smem, size = 0x4, offset = 0x4, fixed_abs, tag = 'smem constant byte address 0x4 - core index']
  #allocation1 [shape = 'u32[72,128]{1,0:T(1,128)}', space=vmem, size = 0x9000, scoped, tag = 'internal scratch']
  #allocation2 [shape = 'f32[8,128]{1,0:T(8,128)}', space=vmem, size = 0x1000, scoped, tag = 'scratch operand']
  #allocation3 [shape = 'f32[1]{0:T(128)S(6)}', space=smem, size = 0x200, scoped, tag = 'scoped memory for tpu_custom_call.1']
  %s0 = inlined_call_operand.<no memory space> [shape: f32[1], index: 0, kind: input, shape index: {}]
  %s1 = inlined_call_operand.hbm [shape: f32[8,128], index: 1, kind: input, shape index: {}]
  %s2 = inlined_call_operand.hbm [shape: f32[128,128], index: 2, kind: input, shape index: {}]
  %s3 = inlined_call_operand.hbm [shape: f32[128,128], index: 3, kind: input, shape index: {}]
  %s4 = inlined_call_operand.hbm [shape: f32[8,128], index: 4, kind: output, shape index: {}]
  %s5 = sld [smem:[#allocation0]]
  $region46: #{tpu_custom_call.1} parent=0
    _
  %s7 = ssub.s32 1, %s5
  %s8 = scalar_select 0, %s7, %s5
  %9 = sst [smem:[#allocation3]] %s0
  $region1: #{tpu_custom_call.1} parent=0
    #allocation4 [shape = 'u8[4096]{0}', space=vmem, size = 0x1000, scoped, tag = 'input window, operand 1, single buffered']
    #allocation5 [shape = 's32[1]{0}', space=sflag, size = 0x4, scoped, tag = 'scoped memory for tpu_custom_call.1']
    #allocation6 [shape = 's32[1]{0}', space=sflag, size = 0x4, scoped, tag = 'scoped memory for tpu_custom_call.1']
    #allocation7 [shape = 'u8[65536]{0}', space=vmem, size = 0x10000, scoped, tag = 'input window, operand 2, single buffered']
    #allocation8 [shape = 's32[1]{0}', space=sflag, size = 0x4, scoped, tag = 'scoped memory for tpu_custom_call.1']
    #allocation9 [shape = 'u8[65536]{0}', space=vmem, size = 0x10000, scoped, tag = 'input window, operand 3, single buffered']
    #allocation10 [shape = 'u8[4096]{0}', space=vmem, size = 0x1000, scoped, tag = 'output window, operand 0, single buffered']
    %10 = vsyncpa [#allocation5], 0
    %11 = vsyncpa [#allocation8], 0
    %12 = vsyncpa [#allocation6], 0
    // Predicated region
    $region2: #{tpu_custom_call.1} parent=1 // pred_check
      _
    $region3: #{tpu_custom_call.1} parent=1 // pred_check_branch
      %14 = sbr.rel (0) target = $region5
    $region4: #{tpu_custom_call.1} parent=1 // pred_region
      _
    $region5: #{tpu_custom_call.1} parent=1 // pred_fallthru
      _
    // Predicated region
    $region6: #{tpu_custom_call.1} parent=1 // pred_check
      _
    $region7: #{tpu_custom_call.1} parent=1 // pred_check_branch
      %16 = sbr.rel (0) target = $region9
    $region8: #{tpu_custom_call.1} parent=1 // pred_region
      %18 = vsyncadd [#allocation5], 0
      %s20 = sshll.u32 %s1, 4
      %s21 = int_to_ptr.hbm [resolvable:$true] %s20
      %s22 = sshll.u32 [#allocation4], 4
      %s23 = int_to_ptr.vmem [resolvable:$true] %s22
      %25 = dma.hbm_to_vmem [thread:$0]  %s21, 128, %s23, [#allocation5]
    $region9: #{tpu_custom_call.1} parent=1 // pred_fallthru
      _
    // Predicated region
    $region10: #{tpu_custom_call.1} parent=1 // pred_check
      _
    $region11: #{tpu_custom_call.1} parent=1 // pred_check_branch
      %27 = sbr.rel (0) target = $region13
    $region12: #{tpu_custom_call.1} parent=1 // pred_region
      %29 = vsyncadd [#allocation8], 0
      %s30 = sshll.u32 %s2, 4
      %s31 = int_to_ptr.hbm [resolvable:$true] %s30
      %s32 = sshll.u32 [#allocation7], 4
      %s33 = int_to_ptr.vmem [resolvable:$true] %s32
      %38 = dma.hbm_to_vmem [thread:$0]  %s31, 2048, %s33, [#allocation8], 128, 128, 8
    $region13: #{tpu_custom_call.1} parent=1 // pred_fallthru
      _
    // Predicated region
    $region14: #{tpu_custom_call.1} parent=1 // pred_check
      _
    $region15: #{tpu_custom_call.1} parent=1 // pred_check_branch
      %40 = sbr.rel (0) target = $region17
    $region16: #{tpu_custom_call.1} parent=1 // pred_region
      %42 = vsyncadd [#allocation8], 0
      %s43 = sshll.u32 %s3, 4
      %s44 = int_to_ptr.hbm [resolvable:$true] %s43
      %s45 = sshll.u32 [#allocation9], 4
      %s46 = int_to_ptr.vmem [resolvable:$true] %s45
      %51 = dma.hbm_to_vmem [thread:$0]  %s44, 2048, %s46, [#allocation8], 128, 128, 8
    $region17: #{tpu_custom_call.1} parent=1 // pred_fallthru
      _
    // Predicated region
    $region18: #{tpu_custom_call.1} parent=1 // pred_check
      _
    $region19: #{tpu_custom_call.1} parent=1 // pred_check_branch
      %53 = sbr.rel (0) target = $region21
    $region20: #{tpu_custom_call.1} parent=1 // pred_region
      %55 = dma.done [#allocation5], 128
    $region21: #{tpu_custom_call.1} parent=1 // pred_fallthru
      _
    // Predicated region
    $region22: #{tpu_custom_call.1} parent=1 // pred_check
      _
    $region23: #{tpu_custom_call.1} parent=1 // pred_check_branch
      %57 = sbr.rel (0) target = $region25
    $region24: #{tpu_custom_call.1} parent=1 // pred_region
      %59 = dma.done [#allocation8], 2048
    $region25: #{tpu_custom_call.1} parent=1 // pred_fallthru
      _
    // Predicated region
    $region26: #{tpu_custom_call.1} parent=1 // pred_check
      _
    $region27: #{tpu_custom_call.1} parent=1 // pred_check_branch
      %61 = sbr.rel (0) target = $region29
    $region28: #{tpu_custom_call.1} parent=1 // pred_region
      %63 = dma.done [#allocation8], 2048
    $region29: #{tpu_custom_call.1} parent=1 // pred_fallthru
      _
    %p64 = scmp.eq.s32.totalorder 0, 0
    // Predicated region
    $region30: #{tpu_custom_call.1} parent=1 // pred_check
      %p65 = pneg %p64
    $region31: #{tpu_custom_call.1} parent=1 // pred_check_branch
      %67 = sbr.rel (%p65) target = $region33
    $region32: #{tpu_custom_call.1} parent=1 // pred_region
      %68 = vst [vmem:[#allocation2] sm:$0xff] 0.0
    $region33: #{tpu_custom_call.1} parent=1 // pred_fallthru
      _
    %s69 = sld [smem:[#allocation3]]
    %v70 = vld [vmem:[#allocation7] sm:$0xff]
    %v71 = vld [vmem:[#allocation7 + $0x8] sm:$0xff]
    %v72 = vld [vmem:[#allocation7 + $0x10] sm:$0xff]
    %v73 = vld [vmem:[#allocation7 + $0x18] sm:$0xff]
    %v74 = vld [vmem:[#allocation7 + $0x20] sm:$0xff]
    %v75 = vld [vmem:[#allocation7 + $0x28] sm:$0xff]
    %v76 = vld [vmem:[#allocation7 + $0x30] sm:$0xff]
    %v77 = vld [vmem:[#allocation7 + $0x38] sm:$0xff]
    %v78 = vld [vmem:[#allocation7 + $0x40] sm:$0xff]
    %v79 = vld [vmem:[#allocation7 + $0x48] sm:$0xff]
    %v80 = vld [vmem:[#allocation7 + $0x50] sm:$0xff]
    %v81 = vld [vmem:[#allocation7 + $0x58] sm:$0xff]
    %v82 = vld [vmem:[#allocation7 + $0x60] sm:$0xff]
    %v83 = vld [vmem:[#allocation7 + $0x68] sm:$0xff]
    %v84 = vld [vmem:[#allocation7 + $0x70] sm:$0xff]
    %v85 = vld [vmem:[#allocation7 + $0x78] sm:$0xff]
    %v86 = vld [vmem:[#allocation9] sm:$0xff]
    %v87 = vld [vmem:[#allocation9 + $0x8] sm:$0xff]
    %v88 = vld [vmem:[#allocation9 + $0x10] sm:$0xff]
    %v89 = vld [vmem:[#allocation9 + $0x18] sm:$0xff]
    %v90 = vld [vmem:[#allocation9 + $0x20] sm:$0xff]
    %v91 = vld [vmem:[#allocation9 + $0x28] sm:$0xff]
    %v92 = vld [vmem:[#allocation9 + $0x30] sm:$0xff]
    %v93 = vld [vmem:[#allocation9 + $0x38] sm:$0xff]
    %v94 = vld [vmem:[#allocation9 + $0x40] sm:$0xff]
    %v95 = vld [vmem:[#allocation9 + $0x48] sm:$0xff]
    %v96 = vld [vmem:[#allocation9 + $0x50] sm:$0xff]
    %v97 = vld [vmem:[#allocation9 + $0x58] sm:$0xff]
    %v98 = vld [vmem:[#allocation9 + $0x60] sm:$0xff]
    %v99 = vld [vmem:[#allocation9 + $0x68] sm:$0xff]
    %v100 = vld [vmem:[#allocation9 + $0x70] sm:$0xff]
    %v101 = vld [vmem:[#allocation9 + $0x78] sm:$0xff]
    %v102 = vstv %s69
    %vm103 = vcmp.lt.f32.partialorder %v86, %v102
    %vm104 = vcmp.lt.f32.partialorder %v87, %v102
    %vm105 = vcmp.lt.f32.partialorder %v88, %v102
    %vm106 = vcmp.lt.f32.partialorder %v89, %v102
    %vm107 = vcmp.lt.f32.partialorder %v90, %v102
    %vm108 = vcmp.lt.f32.partialorder %v91, %v102
    %vm109 = vcmp.lt.f32.partialorder %v92, %v102
    %vm110 = vcmp.lt.f32.partialorder %v93, %v102
    %vm111 = vcmp.lt.f32.partialorder %v94, %v102
    %vm112 = vcmp.lt.f32.partialorder %v95, %v102
    %vm113 = vcmp.lt.f32.partialorder %v96, %v102
    %vm114 = vcmp.lt.f32.partialorder %v97, %v102
    %vm115 = vcmp.lt.f32.partialorder %v98, %v102
    %vm116 = vcmp.lt.f32.partialorder %v99, %v102
    %vm117 = vcmp.lt.f32.partialorder %v100, %v102
    %vm118 = vcmp.lt.f32.partialorder %v101, %v102
    %v119 = vsel %vm103, 0.0, %v70
    %v120 = vsel %vm104, 0.0, %v71
    %v121 = vsel %vm105, 0.0, %v72
    %v122 = vsel %vm106, 0.0, %v73
    %v123 = vsel %vm107, 0.0, %v74
    %v124 = vsel %vm108, 0.0, %v75
    %v125 = vsel %vm109, 0.0, %v76
    %v126 = vsel %vm110, 0.0, %v77
    %v127 = vsel %vm111, 0.0, %v78
    %v128 = vsel %vm112, 0.0, %v79
    %v129 = vsel %vm113, 0.0, %v80
    %v130 = vsel %vm114, 0.0, %v81
    %v131 = vsel %vm115, 0.0, %v82
    %v132 = vsel %vm116, 0.0, %v83
    %v133 = vsel %vm117, 0.0, %v84
    %v134 = vsel %vm118, 0.0, %v85
    %v135 = vld [vmem:[#allocation2] sm:$0xff]
    %v136 = vld [vmem:[#allocation4] sm:$0xff]
    %137 = vmatpush.msra.mxu0 %v134
    %138 = vmatpush.msra.mxu0 %v133
    %139 = vmatpush.msra.mxu0 %v132
    %140 = vmatpush.msra.mxu0 %v131
    %141 = vmatpush.msra.mxu0 %v130
    %142 = vmatpush.msra.mxu0 %v129
    %143 = vmatpush.msra.mxu0 %v128
    %144 = vmatpush.msra.mxu0 %v127
    %145 = vmatpush.msra.mxu0 %v126
    %146 = vmatpush.msra.mxu0 %v125
    %147 = vmatpush.msra.mxu0 %v124
    %148 = vmatpush.msra.mxu0 %v123
    %149 = vmatpush.msra.mxu0 %v122
    %150 = vmatpush.msra.mxu0 %v121
    %151 = vmatpush.msra.mxu0 %v120
    %152 = vmatpush.msra.mxu0 %v119
    %153 = vmatmul.f32.gmra.mxu0 %v136
    %v154 = vpop.f32.mrf.mxu0
    %v155 = vadd.f32 0.0, %v154
    %156 = vdwg.mxu0
    %v157 = vadd.f32 %v135, %v155
    %158 = vst [vmem:[#allocation2] sm:$0xff] %v157
    // Predicated region
    $region34: #{tpu_custom_call.1} parent=1 // pred_check
      %p159 = pneg %p64
    $region35: #{tpu_custom_call.1} parent=1 // pred_check_branch
      %161 = sbr.rel (%p159) target = $region37
    $region36: #{tpu_custom_call.1} parent=1 // pred_region
      %v162 = vld [vmem:[#allocation2] sm:$0xff]
      %163 = vst [vmem:[#allocation10] sm:$0xff] %v162
    $region37: #{tpu_custom_call.1} parent=1 // pred_fallthru
      _
    // Predicated region
    $region38: #{tpu_custom_call.1} parent=1 // pred_check
      _
    $region39: #{tpu_custom_call.1} parent=1 // pred_check_branch
      %165 = sbr.rel (0) target = $region41
    $region40: #{tpu_custom_call.1} parent=1 // pred_region
      %167 = vsyncadd [#allocation6], 0
      %s169 = sshll.u32 [#allocation10], 4
      %s170 = int_to_ptr.vmem [resolvable:$true] %s169
      %s171 = sshll.u32 %s4, 4
      %s172 = int_to_ptr.hbm [resolvable:$true] %s171
      %174 = dma.vmem_to_hbm [thread:$0]  %s170, 128, %s172, [#allocation6]
    $region41: #{tpu_custom_call.1} parent=1 // pred_fallthru
      _
    // Predicated region
    $region42: #{tpu_custom_call.1} parent=1 // pred_check
      _
    $region43: #{tpu_custom_call.1} parent=1 // pred_check_branch
      %176 = sbr.rel (0) target = $region45
    $region44: #{tpu_custom_call.1} parent=1 // pred_region
      %178 = dma.done [#allocation6], 128
    $region45: #{tpu_custom_call.1} parent=1 // pred_fallthru
      _
    %179 = vsyncpa [#allocation5], 1
    %180 = vsyncpa [#allocation8], 1
    %181 = vsyncpa [#allocation6], 1

</llo_original>
